<compile_context>
chip_gen: v5e
topology: v5e:2x2
jax: 0.10.0
libtpu: 0.0.40
codegen_flags: <defaults>
</compile_context>

<pallas_src>
import functools

import jax
import jax.numpy as jnp
from jax import lax
from jax.experimental import pallas as pl
from jax.experimental.pallas import tpu as pltpu


def mb_block_kernel(x_ref, wd_ref, b1_ref, wp_ref, b2_ref, o_ref, xpad_ref,
                    *, H, W):
    """One batch element per grid step, (C, H*W) lane-dense layout.

    x_ref:    (1, Cin, H*W)            input slab (VMEM)
    wd_ref:   (9, Cin, 1)              depthwise taps (kh*3+kw), BN1 folded
    b1_ref:   (Cin, 1)                 folded BN1 bias
    wp_ref:   (Cout, Cin)              pointwise weights, BN2 folded
    b2_ref:   (Cout, 1)                folded BN2 bias
    o_ref:    (1, Cout, H*W)           output slab
    xpad_ref: (Cin, H*W + 2*(W+1))     VMEM scratch: zero halo, flattened
    """
    HW = H * W
    pad = W + 1
    cin = x_ref.shape[1]

    # ---- padding=1 in VMEM: zero only the halo strips, write the interior ---
    zero_halo = jnp.zeros((cin, pad), dtype=xpad_ref.dtype)
    xpad_ref[:, 0:pad] = zero_halo
    xpad_ref[:, pad + HW:pad + HW + pad] = zero_halo
    xpad_ref[:, pad:pad + HW] = x_ref[0]

    # Column-validity masks for the +/-1 lane shifts (row shifts are handled
    # automatically by the zero halo).
    idx = lax.broadcasted_iota(jnp.int32, (1, HW), 1)
    col = idx % W
    not_first_col = col > 0          # valid when reading column j-1
    not_last_col = col < (W - 1)     # valid when reading column j+1

    # ---- depthwise 3x3 conv (VPU MACs) with folded BN1; f32 accumulation ----
    acc = jnp.broadcast_to(b1_ref[...], (cin, HW)).astype(jnp.float32)
    for dw in (-1, 0, 1):
        part = jnp.zeros((cin, HW), jnp.float32)
        for dh in (-1, 0, 1):
            d = dh * W + dw
            tap = wd_ref[(dh + 1) * 3 + (dw + 1)]        # (Cin, 1)
            part = part + xpad_ref[:, pl.ds(pad + d, HW)] * tap
        if dw == -1:
            part = jnp.where(not_first_col, part, 0.0)
        elif dw == 1:
            part = jnp.where(not_last_col, part, 0.0)
        acc = acc + part
    y1 = acc * jax.nn.sigmoid(acc)                       # Swish, (Cin, HW) f32

    # ---- pointwise 1x1 conv: (Cout,Cin)@(Cin,HW) -> lane-dense (Cout,HW) ----
    y2 = jnp.dot(wp_ref[...], y1, preferred_element_type=jnp.float32)
    y2 = y2 + b2_ref[...]                                # (Cout, 1) broadcast
    y2 = y2 * jax.nn.sigmoid(y2)                         # Swish, f32
    o_ref[0] = y2.astype(o_ref.dtype)


def mb_block_forward(x_nchw, w_dw, gamma1, beta1, mean1, var1,
                     w_pw, gamma2, beta2, mean2, var2, eps=1e-5):
    """MbBlock.forward (stride=1, swish activation), eval-mode BatchNorm."""
    N, Cin, H, W = x_nchw.shape
    Cout = w_pw.shape[0]
    HW = H * W

    # NCHW -> (N, Cin, H*W): a free reshape (no HBM transpose pass).
    x_flat = x_nchw.reshape(N, Cin, HW).astype(jnp.float32)

    inv1 = gamma1 / jnp.sqrt(var1 + eps)
    inv2 = gamma2 / jnp.sqrt(var2 + eps)

    # Depthwise weight (Cin, 1, 3, 3) -> (9, Cin, 1) taps (kh*3+kw); BN1 folded.
    wd = (jnp.transpose(w_dw[:, 0, :, :], (1, 2, 0)).reshape(9, Cin)
          * inv1[None, :])[:, :, None].astype(jnp.float32)
    b1 = (beta1 - mean1 * inv1).reshape(Cin, 1).astype(jnp.float32)

    # Pointwise weight (Cout, Cin, 1, 1) -> (Cout, Cin); BN2 folded.
    wp = (w_pw[:, :, 0, 0] * inv2[:, None]).astype(jnp.float32)
    b2 = (beta2 - mean2 * inv2).reshape(Cout, 1).astype(jnp.float32)

    kernel = functools.partial(mb_block_kernel, H=H, W=W)

    out_flat = pl.pallas_call(
        kernel,
        out_shape=jax.ShapeDtypeStruct((N, Cout, HW), x_nchw.dtype),
        grid_spec=pltpu.PrefetchScalarGridSpec(
            num_scalar_prefetch=0,
            grid=(N,),
            in_specs=[
                pl.BlockSpec((1, Cin, HW), lambda n: (n, 0, 0)),
                pl.BlockSpec((9, Cin, 1), lambda n: (0, 0, 0)),
                pl.BlockSpec((Cin, 1), lambda n: (0, 0)),
                pl.BlockSpec((Cout, Cin), lambda n: (0, 0)),
                pl.BlockSpec((Cout, 1), lambda n: (0, 0)),
            ],
            out_specs=pl.BlockSpec((1, Cout, HW), lambda n: (n, 0, 0)),
            scratch_shapes=[
                pltpu.VMEM((Cin, HW + 2 * (W + 1)), jnp.float32)],
        ),
        compiler_params=pltpu.CompilerParams(
            dimension_semantics=("parallel",)),
    )(x_flat, wd, b1, wp, b2)

    # (N, Cout, H*W) -> NCHW: free reshape.
    return out_flat.reshape(N, Cout, H, W)


def reference_forward(x, w_dw, gamma1, beta1, mean1, var1,
                      w_pw, gamma2, beta2, mean2, var2, eps=1e-5):
    Cin = x.shape[1]
    y = lax.conv_general_dilated(
        x, w_dw, window_strides=(1, 1), padding=((1, 1), (1, 1)),
        dimension_numbers=("NCHW", "OIHW", "NCHW"),
        feature_group_count=Cin)
    inv1 = gamma1 / jnp.sqrt(var1 + eps)
    y = y * inv1[None, :, None, None] + (beta1 - mean1 * inv1)[None, :, None, None]
    y = y * jax.nn.sigmoid(y)
    y = lax.conv_general_dilated(
        y, w_pw, window_strides=(1, 1), padding=((0, 0), (0, 0)),
        dimension_numbers=("NCHW", "OIHW", "NCHW"))
    inv2 = gamma2 / jnp.sqrt(var2 + eps)
    y = y * inv2[None, :, None, None] + (beta2 - mean2 * inv2)[None, :, None, None]
    return y * jax.nn.sigmoid(y)


if __name__ == "__main__":
    key = jax.random.PRNGKey(0)
    keys = jax.random.split(key, 11)

    N, Cin, Cout, H, W = 2, 4, 8, 16, 16

    x = jax.random.normal(keys[0], (N, Cin, H, W), dtype=jnp.float32)
    # conv1: depthwise, weight (in_planes, 1, 3, 3), groups=in_planes, no bias.
    w_dw = jax.random.normal(keys[1], (Cin, 1, 3, 3), dtype=jnp.float32) * 0.3
    # conv2: pointwise, weight (out_planes, in_planes, 1, 1), no bias.
    w_pw = jax.random.normal(keys[2], (Cout, Cin, 1, 1), dtype=jnp.float32) * 0.3
    # BatchNorm2d params / running stats (eval mode).
    gamma1 = jax.random.normal(keys[3], (Cin,), dtype=jnp.float32) * 0.1 + 1.0
    beta1 = jax.random.normal(keys[4], (Cin,), dtype=jnp.float32) * 0.1
    mean1 = jax.random.normal(keys[5], (Cin,), dtype=jnp.float32) * 0.1
    var1 = jnp.abs(jax.random.normal(keys[6], (Cin,), dtype=jnp.float32)) + 0.5
    gamma2 = jax.random.normal(keys[7], (Cout,), dtype=jnp.float32) * 0.1 + 1.0
    beta2 = jax.random.normal(keys[8], (Cout,), dtype=jnp.float32) * 0.1
    mean2 = jax.random.normal(keys[9], (Cout,), dtype=jnp.float32) * 0.1
    var2 = jnp.abs(jax.random.normal(keys[10], (Cout,), dtype=jnp.float32)) + 0.5

    out = mb_block_forward(x, w_dw, gamma1, beta1, mean1, var1,
                           w_pw, gamma2, beta2, mean2, var2)
    out = jax.block_until_ready(out)

    ref = reference_forward(x, w_dw, gamma1, beta1, mean1, var1,
                            w_pw, gamma2, beta2, mean2, var2)
    assert out.shape == (N, Cout, H, W), out.shape
    assert jnp.allclose(out, ref, atol=1e-4, rtol=1e-4), \
        float(jnp.max(jnp.abs(out - ref)))

    print("KERNEL_OK")
</pallas_src>

<mosaic_0001>
module attributes {stable_mosaic.version = 11 : i64} {
  func.func @mb_block_kernel(%arg0: i32, %arg1: memref<1x4x256xf32, #tpu.memory_space<vmem>>, %arg2: memref<9x4x1xf32, #tpu.memory_space<vmem>>, %arg3: memref<4x1xf32, #tpu.memory_space<vmem>>, %arg4: memref<8x4xf32, #tpu.memory_space<vmem>>, %arg5: memref<8x1xf32, #tpu.memory_space<vmem>>, %arg6: memref<1x8x256xf32, #tpu.memory_space<vmem>>, %arg7: memref<4x290xf32, #tpu.memory_space<vmem>>) attributes {dimension_semantics = [#tpu.dimension_semantics<parallel>], iteration_bounds = array<i64: 2>, scalar_prefetch = 0 : i64, scratch_operands = 1 : i64, tpu.core_type = #tpu.core_type<tc>, window_params = [{transform_indices = @transform_0, window_bounds = array<i64: 1, 4, 256>}, {pipeline_mode = #tpu.pipeline_mode<synchronous>, transform_indices = @transform_1, window_bounds = array<i64: 9, 4, 1>}, {pipeline_mode = #tpu.pipeline_mode<synchronous>, transform_indices = @transform_2, window_bounds = array<i64: 4, 1>}, {pipeline_mode = #tpu.pipeline_mode<synchronous>, transform_indices = @transform_3, window_bounds = array<i64: 8, 4>}, {pipeline_mode = #tpu.pipeline_mode<synchronous>, transform_indices = @transform_4, window_bounds = array<i64: 8, 1>}, {transform_indices = @transform_5, window_bounds = array<i64: 1, 8, 256>}]} {
    %cst = arith.constant 0.000000e+00 : f32
    %0 = vector.broadcast %cst : f32 to vector<4x17xf32>
    %c0 = arith.constant 0 : index
    %c0_0 = arith.constant 0 : index
    %1 = vector.load %arg7[%c0, %c0_0] : memref<4x290xf32, #tpu.memory_space<vmem>>, vector<4x17xf32>
    tpu.vector_store %arg7[%c0, %c0_0], %0 {strides = array<i32>} : memref<4x290xf32, #tpu.memory_space<vmem>>, vector<4x17xf32>,
    %c0_1 = arith.constant 0 : index
    %c273 = arith.constant 273 : index
    %2 = vector.load %arg7[%c0_1, %c273] : memref<4x290xf32, #tpu.memory_space<vmem>>, vector<4x17xf32>
    tpu.vector_store %arg7[%c0_1, %c273], %0 {strides = array<i32>} : memref<4x290xf32, #tpu.memory_space<vmem>>, vector<4x17xf32>,
    %c0_2 = arith.constant 0 : index
    %c0_3 = arith.constant 0 : index
    %c0_4 = arith.constant 0 : index
    %3 = vector.load %arg1[%c0_2, %c0_3, %c0_4] : memref<1x4x256xf32, #tpu.memory_space<vmem>>, vector<1x4x256xf32>
    %4 = vector.shape_cast %3 : vector<1x4x256xf32> to vector<4x256xf32>
    %c0_5 = arith.constant 0 : index
    %c17 = arith.constant 17 : index
    %5 = vector.load %arg7[%c0_5, %c17] : memref<4x290xf32, #tpu.memory_space<vmem>>, vector<4x256xf32>
    tpu.vector_store %arg7[%c0_5, %c17], %4 {strides = array<i32>} : memref<4x290xf32, #tpu.memory_space<vmem>>, vector<4x256xf32>,
    %6 = tpu.iota {dimensions = array<i32: 1>} : vector<1x256xi32>
    %c16_i32 = arith.constant 16 : i32
    %c0_i32 = arith.constant 0 : i32
    %7 = arith.cmpi eq, %c16_i32, %c0_i32 : i32
    %c1_i32 = arith.constant 1 : i32
    %8 = arith.select %7, %c1_i32, %c16_i32 : i32
    %9 = vector.broadcast %8 : i32 to vector<1x256xi32>
    %10 = arith.remsi %6, %9 : vector<1x256xi32>
    %c0_i32_6 = arith.constant 0 : i32
    %11 = vector.broadcast %c0_i32_6 : i32 to vector<1x256xi32>
    %12 = arith.cmpi ne, %10, %11 : vector<1x256xi32>
    %c0_i32_7 = arith.constant 0 : i32
    %13 = vector.broadcast %c0_i32_7 : i32 to vector<1x256xi32>
    %14 = arith.cmpi slt, %10, %13 : vector<1x256xi32>
    %c0_i32_8 = arith.constant 0 : i32
    %15 = arith.cmpi slt, %8, %c0_i32_8 : i32
    %16 = vector.broadcast %15 : i1 to vector<1x256xi1>
    %17 = vector.broadcast %16 : vector<1x256xi1> to vector<1x256xi1>
    %18 = arith.xori %14, %17 : vector<1x256xi1>
    %19 = arith.andi %18, %12 : vector<1x256xi1>
    %20 = vector.broadcast %8 : i32 to vector<1x256xi32>
    %21 = arith.addi %10, %20 : vector<1x256xi32>
    %22 = arith.select %19, %21, %10 : vector<1x256xi1>, vector<1x256xi32>
    %c0_i32_9 = arith.constant 0 : i32
    %23 = vector.broadcast %c0_i32_9 : i32 to vector<1x256xi32>
    %24 = arith.cmpi sgt, %22, %23 : vector<1x256xi32>
    %c15_i32 = arith.constant 15 : i32
    %25 = vector.broadcast %c15_i32 : i32 to vector<1x256xi32>
    %26 = arith.cmpi slt, %22, %25 : vector<1x256xi32>
    %c0_10 = arith.constant 0 : index
    %c0_11 = arith.constant 0 : index
    %27 = vector.load %arg3[%c0_10, %c0_11] : memref<4x1xf32, #tpu.memory_space<vmem>>, vector<4x1xf32>
    %28 = vector.shape_cast %27 : vector<4x1xf32> to vector<4x1xf32>
    %29 = vector.broadcast %28 : vector<4x1xf32> to vector<4x256xf32>
    %cst_12 = arith.constant 0.000000e+00 : f32
    %30 = vector.broadcast %cst_12 : f32 to vector<4x256xf32>
    %c0_13 = arith.constant 0 : index
    %c0_14 = arith.constant 0 : index
    %c0_15 = arith.constant 0 : index
    %31 = vector.load %arg2[%c0_13, %c0_14, %c0_15] : memref<9x4x1xf32, #tpu.memory_space<vmem>>, vector<1x4x1xf32>
    %32 = vector.shape_cast %31 : vector<1x4x1xf32> to vector<4x1xf32>
    %c0_16 = arith.constant 0 : index
    %c0_17 = arith.constant 0 : index
    %33 = vector.load %arg7[%c0_16, %c0_17] : memref<4x290xf32, #tpu.memory_space<vmem>>, vector<4x256xf32>
    %34 = vector.broadcast %32 : vector<4x1xf32> to vector<4x256xf32>
    %35 = arith.mulf %33, %34 : vector<4x256xf32>
    %36 = arith.addf %30, %35 : vector<4x256xf32>
    %c3 = arith.constant 3 : index
    %c0_18 = arith.constant 0 : index
    %c0_19 = arith.constant 0 : index
    %37 = vector.load %arg2[%c3, %c0_18, %c0_19] : memref<9x4x1xf32, #tpu.memory_space<vmem>>, vector<1x4x1xf32>
    %38 = vector.shape_cast %37 : vector<1x4x1xf32> to vector<4x1xf32>
    %c0_20 = arith.constant 0 : index
    %c16 = arith.constant 16 : index
    %39 = vector.load %arg7[%c0_20, %c16] : memref<4x290xf32, #tpu.memory_space<vmem>>, vector<4x256xf32>
    %40 = vector.broadcast %38 : vector<4x1xf32> to vector<4x256xf32>
    %41 = arith.mulf %39, %40 : vector<4x256xf32>
    %42 = arith.addf %36, %41 : vector<4x256xf32>
    %c6 = arith.constant 6 : index
    %c0_21 = arith.constant 0 : index
    %c0_22 = arith.constant 0 : index
    %43 = vector.load %arg2[%c6, %c0_21, %c0_22] : memref<9x4x1xf32, #tpu.memory_space<vmem>>, vector<1x4x1xf32>
    %44 = vector.shape_cast %43 : vector<1x4x1xf32> to vector<4x1xf32>
    %c0_23 = arith.constant 0 : index
    %c32 = arith.constant 32 : index
    %45 = vector.load %arg7[%c0_23, %c32] : memref<4x290xf32, #tpu.memory_space<vmem>>, vector<4x256xf32>
    %46 = vector.broadcast %44 : vector<4x1xf32> to vector<4x256xf32>
    %47 = arith.mulf %45, %46 : vector<4x256xf32>
    %48 = arith.addf %42, %47 : vector<4x256xf32>
    %cst_24 = arith.constant 0.000000e+00 : f32
    %49 = vector.shape_cast %24 : vector<1x256xi1> to vector<1x256xi1>
    %50 = vector.broadcast %49 : vector<1x256xi1> to vector<4x256xi1>
    %51 = vector.broadcast %cst_24 : f32 to vector<4x256xf32>
    %52 = arith.select %50, %48, %51 : vector<4x256xi1>, vector<4x256xf32>
    %53 = arith.addf %29, %52 : vector<4x256xf32>
    %cst_25 = arith.constant 0.000000e+00 : f32
    %54 = vector.broadcast %cst_25 : f32 to vector<4x256xf32>
    %c1 = arith.constant 1 : index
    %c0_26 = arith.constant 0 : index
    %c0_27 = arith.constant 0 : index
    %55 = vector.load %arg2[%c1, %c0_26, %c0_27] : memref<9x4x1xf32, #tpu.memory_space<vmem>>, vector<1x4x1xf32>
    %56 = vector.shape_cast %55 : vector<1x4x1xf32> to vector<4x1xf32>
    %c0_28 = arith.constant 0 : index
    %c1_29 = arith.constant 1 : index
    %57 = vector.load %arg7[%c0_28, %c1_29] : memref<4x290xf32, #tpu.memory_space<vmem>>, vector<4x256xf32>
    %58 = vector.broadcast %56 : vector<4x1xf32> to vector<4x256xf32>
    %59 = arith.mulf %57, %58 : vector<4x256xf32>
    %60 = arith.addf %54, %59 : vector<4x256xf32>
    %c4 = arith.constant 4 : index
    %c0_30 = arith.constant 0 : index
    %c0_31 = arith.constant 0 : index
    %61 = vector.load %arg2[%c4, %c0_30, %c0_31] : memref<9x4x1xf32, #tpu.memory_space<vmem>>, vector<1x4x1xf32>
    %62 = vector.shape_cast %61 : vector<1x4x1xf32> to vector<4x1xf32>
    %c0_32 = arith.constant 0 : index
    %c17_33 = arith.constant 17 : index
    %63 = vector.load %arg7[%c0_32, %c17_33] : memref<4x290xf32, #tpu.memory_space<vmem>>, vector<4x256xf32>
    %64 = vector.broadcast %62 : vector<4x1xf32> to vector<4x256xf32>
    %65 = arith.mulf %63, %64 : vector<4x256xf32>
    %66 = arith.addf %60, %65 : vector<4x256xf32>
    %c7 = arith.constant 7 : index
    %c0_34 = arith.constant 0 : index
    %c0_35 = arith.constant 0 : index
    %67 = vector.load %arg2[%c7, %c0_34, %c0_35] : memref<9x4x1xf32, #tpu.memory_space<vmem>>, vector<1x4x1xf32>
    %68 = vector.shape_cast %67 : vector<1x4x1xf32> to vector<4x1xf32>
    %c0_36 = arith.constant 0 : index
    %c33 = arith.constant 33 : index
    %69 = vector.load %arg7[%c0_36, %c33] : memref<4x290xf32, #tpu.memory_space<vmem>>, vector<4x256xf32>
    %70 = vector.broadcast %68 : vector<4x1xf32> to vector<4x256xf32>
    %71 = arith.mulf %69, %70 : vector<4x256xf32>
    %72 = arith.addf %66, %71 : vector<4x256xf32>
    %73 = arith.addf %53, %72 : vector<4x256xf32>
    %cst_37 = arith.constant 0.000000e+00 : f32
    %74 = vector.broadcast %cst_37 : f32 to vector<4x256xf32>
    %c2 = arith.constant 2 : index
    %c0_38 = arith.constant 0 : index
    %c0_39 = arith.constant 0 : index
    %75 = vector.load %arg2[%c2, %c0_38, %c0_39] : memref<9x4x1xf32, #tpu.memory_space<vmem>>, vector<1x4x1xf32>
    %76 = vector.shape_cast %75 : vector<1x4x1xf32> to vector<4x1xf32>
    %c0_40 = arith.constant 0 : index
    %c2_41 = arith.constant 2 : index
    %77 = vector.load %arg7[%c0_40, %c2_41] : memref<4x290xf32, #tpu.memory_space<vmem>>, vector<4x256xf32>
    %78 = vector.broadcast %76 : vector<4x1xf32> to vector<4x256xf32>
    %79 = arith.mulf %77, %78 : vector<4x256xf32>
    %80 = arith.addf %74, %79 : vector<4x256xf32>
    %c5 = arith.constant 5 : index
    %c0_42 = arith.constant 0 : index
    %c0_43 = arith.constant 0 : index
    %81 = vector.load %arg2[%c5, %c0_42, %c0_43] : memref<9x4x1xf32, #tpu.memory_space<vmem>>, vector<1x4x1xf32>
    %82 = vector.shape_cast %81 : vector<1x4x1xf32> to vector<4x1xf32>
    %c0_44 = arith.constant 0 : index
    %c18 = arith.constant 18 : index
    %83 = vector.load %arg7[%c0_44, %c18] : memref<4x290xf32, #tpu.memory_space<vmem>>, vector<4x256xf32>
    %84 = vector.broadcast %82 : vector<4x1xf32> to vector<4x256xf32>
    %85 = arith.mulf %83, %84 : vector<4x256xf32>
    %86 = arith.addf %80, %85 : vector<4x256xf32>
    %c8 = arith.constant 8 : index
    %c0_45 = arith.constant 0 : index
    %c0_46 = arith.constant 0 : index
    %87 = vector.load %arg2[%c8, %c0_45, %c0_46] : memref<9x4x1xf32, #tpu.memory_space<vmem>>, vector<1x4x1xf32>
    %88 = vector.shape_cast %87 : vector<1x4x1xf32> to vector<4x1xf32>
    %c0_47 = arith.constant 0 : index
    %c34 = arith.constant 34 : index
    %89 = vector.load %arg7[%c0_47, %c34] : memref<4x290xf32, #tpu.memory_space<vmem>>, vector<4x256xf32>
    %90 = vector.broadcast %88 : vector<4x1xf32> to vector<4x256xf32>
    %91 = arith.mulf %89, %90 : vector<4x256xf32>
    %92 = arith.addf %86, %91 : vector<4x256xf32>
    %cst_48 = arith.constant 0.000000e+00 : f32
    %93 = vector.shape_cast %26 : vector<1x256xi1> to vector<1x256xi1>
    %94 = vector.broadcast %93 : vector<1x256xi1> to vector<4x256xi1>
    %95 = vector.broadcast %cst_48 : f32 to vector<4x256xf32>
    %96 = arith.select %94, %92, %95 : vector<4x256xi1>, vector<4x256xf32>
    %97 = arith.addf %73, %96 : vector<4x256xf32>
    %98 = arith.negf %97 : vector<4x256xf32>
    %99 = math.exp %98 : vector<4x256xf32>
    %cst_49 = arith.constant 1.000000e+00 : f32
    %100 = vector.broadcast %cst_49 : f32 to vector<4x256xf32>
    %101 = arith.addf %100, %99 : vector<4x256xf32>
    %102 = arith.divf %100, %101 : vector<4x256xf32>
    %103 = arith.mulf %97, %102 : vector<4x256xf32>
    %c0_50 = arith.constant 0 : index
    %c0_51 = arith.constant 0 : index
    %104 = vector.load %arg4[%c0_50, %c0_51] : memref<8x4xf32, #tpu.memory_space<vmem>>, vector<8x4xf32>
    %cst_52 = arith.constant dense<0.000000e+00> : vector<8x256xf32>
    %105 = tpu.matmul %104, %103, %cst_52 {dimension_numbers = #tpu.dot_dimension_numbers<[1], [0], [0], [1], [0, 0, 1, 1], [], []>} : vector<8x4xf32>, vector<4x256xf32>, vector<8x256xf32> -> vector<8x256xf32>
    %c0_53 = arith.constant 0 : index
    %c0_54 = arith.constant 0 : index
    %106 = vector.load %arg5[%c0_53, %c0_54] : memref<8x1xf32, #tpu.memory_space<vmem>>, vector<8x1xf32>
    %107 = vector.broadcast %106 : vector<8x1xf32> to vector<8x256xf32>
    %108 = arith.addf %105, %107 : vector<8x256xf32>
    %109 = arith.negf %108 : vector<8x256xf32>
    %110 = math.exp %109 : vector<8x256xf32>
    %cst_55 = arith.constant 1.000000e+00 : f32
    %111 = vector.broadcast %cst_55 : f32 to vector<8x256xf32>
    %112 = arith.addf %111, %110 : vector<8x256xf32>
    %113 = arith.divf %111, %112 : vector<8x256xf32>
    %114 = arith.mulf %108, %113 : vector<8x256xf32>
    %c0_56 = arith.constant 0 : index
    %c0_57 = arith.constant 0 : index
    %c0_58 = arith.constant 0 : index
    %115 = vector.load %arg6[%c0_56, %c0_57, %c0_58] : memref<1x8x256xf32, #tpu.memory_space<vmem>>, vector<1x8x256xf32>
    %116 = vector.shape_cast %115 : vector<1x8x256xf32> to vector<8x256xf32>
    %117 = vector.shape_cast %114 : vector<8x256xf32> to vector<1x8x256xf32>
    tpu.vector_store %arg6[%c0_56, %c0_57, %c0_58], %117 {strides = array<i32>} : memref<1x8x256xf32, #tpu.memory_space<vmem>>, vector<1x8x256xf32>,
    return
  }
  func.func @transform_0(%arg0: i32) -> (i32, i32, i32) {
    %c0_i32 = arith.constant 0 : i32
    %c0_i32_0 = arith.constant 0 : i32
    %c0_i32_1 = arith.constant 0 : i32
    return %arg0, %c0_i32, %c0_i32_0 : i32, i32, i32
  }
  func.func @transform_1(%arg0: i32) -> (i32, i32, i32) {
    %c0_i32 = arith.constant 0 : i32
    %c0_i32_0 = arith.constant 0 : i32
    %c0_i32_1 = arith.constant 0 : i32
    %c0_i32_2 = arith.constant 0 : i32
    return %c0_i32, %c0_i32_0, %c0_i32_1 : i32, i32, i32
  }
  func.func @transform_2(%arg0: i32) -> (i32, i32) {
    %c0_i32 = arith.constant 0 : i32
    %c0_i32_0 = arith.constant 0 : i32
    %c0_i32_1 = arith.constant 0 : i32
    return %c0_i32, %c0_i32_0 : i32, i32
  }
  func.func @transform_3(%arg0: i32) -> (i32, i32) {
    %c0_i32 = arith.constant 0 : i32
    %c0_i32_0 = arith.constant 0 : i32
    %c0_i32_1 = arith.constant 0 : i32
    return %c0_i32, %c0_i32_0 : i32, i32
  }
  func.func @transform_4(%arg0: i32) -> (i32, i32) {
    %c0_i32 = arith.constant 0 : i32
    %c0_i32_0 = arith.constant 0 : i32
    %c0_i32_1 = arith.constant 0 : i32
    return %c0_i32, %c0_i32_0 : i32, i32
  }
  func.func @transform_5(%arg0: i32) -> (i32, i32, i32) {
    %c0_i32 = arith.constant 0 : i32
    %c0_i32_0 = arith.constant 0 : i32
    %c0_i32_1 = arith.constant 0 : i32
    return %arg0, %c0_i32, %c0_i32_0 : i32, i32, i32
  }
}

</mosaic_0001>

<llo_original>
// kernel: tpu_custom_call.1
$region0: #{tpu_custom_call.1}
  #allocation0 [shape = 'u32[]', space=smem, size = 0x4, offset = 0x4, fixed_abs, tag = 'smem constant byte address 0x4 - core index']
  #allocation1 [shape = 'u32[72,128]{1,0:T(1,128)}', space=vmem, size = 0x9000, scoped, tag = 'internal scratch']
  #allocation2 [shape = 'f32[4,290]{1,0:T(4,128)}', space=vmem, size = 0x1800, scoped, tag = 'scratch operand']
  %s0 = inlined_call_operand.vmem [shape: f32[2,4,256], index: 0, kind: input, shape index: {}]
  %s1 = inlined_call_operand.vmem [shape: f32[9,4,1], index: 1, kind: input, shape index: {}]
  %s2 = inlined_call_operand.vmem [shape: f32[4,1], index: 2, kind: input, shape index: {}]
  %s3 = inlined_call_operand.vmem [shape: f32[8,4], index: 3, kind: input, shape index: {}]
  %s4 = inlined_call_operand.vmem [shape: f32[8,1], index: 4, kind: input, shape index: {}]
  %s5 = inlined_call_operand.hbm [shape: f32[2,8,256], index: 5, kind: output, shape index: {}]
  %s6 = sld [smem:[#allocation0]]
  $region53: #{tpu_custom_call.1} parent=0
    _
  %s8 = ssub.s32 1, %s6
  %s9 = scalar_select 0, %s8, %s6
  $region1: #{tpu_custom_call.1} parent=0
    #allocation3 [shape = 'u8[16384]{0}', space=vmem, size = 0x4000, scoped, tag = 'output window, operand 0']
    #allocation4 [shape = 's32[2]{0}', space=sflag, size = 0x8, scoped, tag = 'scoped memory for tpu_custom_call.1']
    %10 = vsyncpa [#allocation4], 0
    %s11 = scalar_lea.sflag [#allocation4], 1
    %12 = vsyncpa %s11, 0
    loop: start=0, step=1, limit=4
    $region2: #{tpu_custom_call.1} parent=1 // loop_pre_header
      _
    $region3: #{tpu_custom_call.1} parent=1 // loop_header
      %s14 = sphi 0, %s18
      %p15 = scmp.ge.s32.totalorder %s14, 4
      %s24 = sphi 0, %s26
      %s27 = sphi 0, %s24
      %s28 = sphi 0, %s27
      %s44 = sphi 0, %s28
      %s48 = sphi 0, %s48
      %s50 = sphi 0, %s48
      %s51 = sphi 0, %s50
      %s65 = sphi 0, %s51
      %s69 = sphi 0, %s69
      %s71 = sphi 0, %s69
      %s72 = sphi 0, %s71
      %s86 = sphi 0, %s72
      %s90 = sphi 0, %s90
      %s92 = sphi 0, %s90
      %s93 = sphi 0, %s92
      %s107 = sphi 0, %s93
      %s111 = sphi 0, %s111
      %s113 = sphi 0, %s111
      %s114 = sphi 0, %s113
      %s128 = sphi 0, %s114
      %s134 = sphi 0, %s136
      %s137 = sphi 0, %s134
      %s138 = sphi 0, %s137
      %s154 = sphi 0, %s138
    $region4: #{tpu_custom_call.1} parent=1 // loop_header_branch
      %17 = sbr.rel (%p15) target = $region8
    $region5: #{tpu_custom_call.1} parent=1 // loop_body
      %s19 = ssub.s32 %s14, 1
      %s20 = ssub.s32 %s14, 2
      %s21 = sadd.s32 %s14, 1
      %s22 = ssub.s32 %s14, %s21
      %p23 = scmp.eq.s32.totalorder %s22, 0
      %s25 = sadd.s32 %s24, 1
      %s26 = scalar_select %p23, %s24, %s25
      %p29 = pneg %p23
      %p30 = scmp.eq.s32.totalorder %s14, 1
      %p31 = por %p29, %p30
      %p32 = scmp.ne.s32.totalorder %s24, %s27
      %p33 = scmp.eq.s32.totalorder %s14, 0
      %p34 = por %p32, %p33
      %p35 = scmp.ne.s32.totalorder %s24, %s27
      %p36 = scmp.eq.s32.totalorder %s19, 1
      %p37 = por %p35, %p36
      %p38 = scmp.ne.s32.totalorder %s27, %s28
      %p39 = scmp.eq.s32.totalorder %s19, 0
      %p40 = por %p38, %p39
      %p41 = scmp.ne.s32.totalorder %s27, %s28
      %p42 = scmp.eq.s32.totalorder %s20, 1
      %p43 = por %p41, %p42
      %p45 = scmp.ne.s32.totalorder %s28, %s44
      %p46 = scmp.eq.s32.totalorder %s20, 0
      %p47 = por %p45, %p46
      %s49 = sadd.s32 %s48, 1
      %p52 = scmp.eq.s32.totalorder %s14, 1
      %p53 = scmp.ne.s32.totalorder %s48, %s50
      %p54 = scmp.eq.s32.totalorder %s14, 0
      %p55 = por %p53, %p54
      %p56 = scmp.ne.s32.totalorder %s48, %s50
      %p57 = scmp.eq.s32.totalorder %s19, 1
      %p58 = por %p56, %p57
      %p59 = scmp.ne.s32.totalorder %s50, %s51
      %p60 = scmp.eq.s32.totalorder %s19, 0
      %p61 = por %p59, %p60
      %p62 = scmp.ne.s32.totalorder %s50, %s51
      %p63 = scmp.eq.s32.totalorder %s20, 1
      %p64 = por %p62, %p63
      %p66 = scmp.ne.s32.totalorder %s51, %s65
      %p67 = scmp.eq.s32.totalorder %s20, 0
      %p68 = por %p66, %p67
      %s70 = sadd.s32 %s69, 1
      %p73 = scmp.eq.s32.totalorder %s14, 1
      %p74 = scmp.ne.s32.totalorder %s69, %s71
      %p75 = scmp.eq.s32.totalorder %s14, 0
      %p76 = por %p74, %p75
      %p77 = scmp.ne.s32.totalorder %s69, %s71
      %p78 = scmp.eq.s32.totalorder %s19, 1
      %p79 = por %p77, %p78
      %p80 = scmp.ne.s32.totalorder %s71, %s72
      %p81 = scmp.eq.s32.totalorder %s19, 0
      %p82 = por %p80, %p81
      %p83 = scmp.ne.s32.totalorder %s71, %s72
      %p84 = scmp.eq.s32.totalorder %s20, 1
      %p85 = por %p83, %p84
      %p87 = scmp.ne.s32.totalorder %s72, %s86
      %p88 = scmp.eq.s32.totalorder %s20, 0
      %p89 = por %p87, %p88
      %s91 = sadd.s32 %s90, 1
      %p94 = scmp.eq.s32.totalorder %s14, 1
      %p95 = scmp.ne.s32.totalorder %s90, %s92
      %p96 = scmp.eq.s32.totalorder %s14, 0
      %p97 = por %p95, %p96
      %p98 = scmp.ne.s32.totalorder %s90, %s92
      %p99 = scmp.eq.s32.totalorder %s19, 1
      %p100 = por %p98, %p99
      %p101 = scmp.ne.s32.totalorder %s92, %s93
      %p102 = scmp.eq.s32.totalorder %s19, 0
      %p103 = por %p101, %p102
      %p104 = scmp.ne.s32.totalorder %s92, %s93
      %p105 = scmp.eq.s32.totalorder %s20, 1
      %p106 = por %p104, %p105
      %p108 = scmp.ne.s32.totalorder %s93, %s107
      %p109 = scmp.eq.s32.totalorder %s20, 0
      %p110 = por %p108, %p109
      %s112 = sadd.s32 %s111, 1
      %p115 = scmp.eq.s32.totalorder %s14, 1
      %p116 = scmp.ne.s32.totalorder %s111, %s113
      %p117 = scmp.eq.s32.totalorder %s14, 0
      %p118 = por %p116, %p117
      %p119 = scmp.ne.s32.totalorder %s111, %s113
      %p120 = scmp.eq.s32.totalorder %s19, 1
      %p121 = por %p119, %p120
      %p122 = scmp.ne.s32.totalorder %s113, %s114
      %p123 = scmp.eq.s32.totalorder %s19, 0
      %p124 = por %p122, %p123
      %p125 = scmp.ne.s32.totalorder %s113, %s114
      %p126 = scmp.eq.s32.totalorder %s20, 1
      %p127 = por %p125, %p126
      %p129 = scmp.ne.s32.totalorder %s114, %s128
      %p130 = scmp.eq.s32.totalorder %s20, 0
      %p131 = por %p129, %p130
      %s132 = ssub.s32 %s14, %s21
      %p133 = scmp.eq.s32.totalorder %s132, 0
      %s135 = sadd.s32 %s134, 1
      %s136 = scalar_select %p133, %s134, %s135
      %p139 = pneg %p133
      %p140 = scmp.eq.s32.totalorder %s14, 1
      %p141 = por %p139, %p140
      %p142 = scmp.ne.s32.totalorder %s134, %s137
      %p143 = scmp.eq.s32.totalorder %s14, 0
      %p144 = por %p142, %p143
      %p145 = scmp.ne.s32.totalorder %s134, %s137
      %p146 = scmp.eq.s32.totalorder %s19, 1
      %p147 = por %p145, %p146
      %p148 = scmp.ne.s32.totalorder %s137, %s138
      %p149 = scmp.eq.s32.totalorder %s19, 0
      %p150 = por %p148, %p149
      %p151 = scmp.ne.s32.totalorder %s137, %s138
      %p152 = scmp.eq.s32.totalorder %s20, 1
      %p153 = por %p151, %p152
      %p155 = scmp.ne.s32.totalorder %s138, %s154
      %p156 = scmp.eq.s32.totalorder %s20, 0
      %p157 = por %p155, %p156
      %p158 = scmp.le.s32.totalorder 1, %s14
      %p159 = scmp.lt.s32.totalorder %s14, 3
      %p160 = pnand %p158, %p159
      %p161 = pneg %p160
      // Predicated region
      $region9: #{tpu_custom_call.1} parent=5 // pred_check
        _
      $region10: #{tpu_custom_call.1} parent=5 // pred_check_branch
        %163 = sbr.rel (%p160) target = $region12
      $region11: #{tpu_custom_call.1} parent=5 // pred_region
        %s164 = ssub.s32 %s14, 1
        // Predicated region
        $region13: #{tpu_custom_call.1} parent=11 // pred_check
          %p165 = pneg %p61
        $region14: #{tpu_custom_call.1} parent=11 // pred_check_branch
          %167 = sbr.rel (%p165) target = $region16
        $region15: #{tpu_custom_call.1} parent=11 // pred_region
          _
        $region16: #{tpu_custom_call.1} parent=11 // pred_fallthru
          _
        // Predicated region
        $region17: #{tpu_custom_call.1} parent=11 // pred_check
          %p168 = pneg %p82
        $region18: #{tpu_custom_call.1} parent=11 // pred_check_branch
          %170 = sbr.rel (%p168) target = $region20
        $region19: #{tpu_custom_call.1} parent=11 // pred_region
          _
        $region20: #{tpu_custom_call.1} parent=11 // pred_fallthru
          _
        // Predicated region
        $region21: #{tpu_custom_call.1} parent=11 // pred_check
          %p171 = pneg %p103
        $region22: #{tpu_custom_call.1} parent=11 // pred_check_branch
          %173 = sbr.rel (%p171) target = $region24
        $region23: #{tpu_custom_call.1} parent=11 // pred_region
          _
        $region24: #{tpu_custom_call.1} parent=11 // pred_fallthru
          _
        // Predicated region
        $region25: #{tpu_custom_call.1} parent=11 // pred_check
          %p174 = pneg %p124
        $region26: #{tpu_custom_call.1} parent=11 // pred_check_branch
          %176 = sbr.rel (%p174) target = $region28
        $region27: #{tpu_custom_call.1} parent=11 // pred_region
          _
        $region28: #{tpu_custom_call.1} parent=11 // pred_fallthru
          _
      $region12: #{tpu_custom_call.1} parent=5 // pred_fallthru
        _
      %p177 = scmp.lt.s32.totalorder %s14, 2
      // Predicated region
      $region29: #{tpu_custom_call.1} parent=5 // pred_check
        %p178 = pneg %p177
      $region30: #{tpu_custom_call.1} parent=5 // pred_check_branch
        %180 = sbr.rel (%p178) target = $region32
      $region31: #{tpu_custom_call.1} parent=5 // pred_region
        // Predicated region
        $region33: #{tpu_custom_call.1} parent=31 // pred_check
          %p181 = pneg %p34
        $region34: #{tpu_custom_call.1} parent=31 // pred_check_branch
          %183 = sbr.rel (%p181) target = $region36
        $region35: #{tpu_custom_call.1} parent=31 // pred_region
          %p184 = scmp.lt.s32.totalorder %s14, 1
          %s185 = scalar_select %p184, %s14, 1
          %s186 = smul.addr %s185, 2
          %s187 = smul.addr %s186, 4
          %s188 = scalar_lea.vmem %s0, %s187
        $region36: #{tpu_custom_call.1} parent=31 // pred_fallthru
          _
      $region32: #{tpu_custom_call.1} parent=5 // pred_fallthru
        _
      %p189 = scmp.le.s32.totalorder 1, %s14
      %p190 = scmp.lt.s32.totalorder %s14, 3
      %p191 = pnand %p189, %p190
      %p192 = pneg %p191
      // Predicated region
      $region37: #{tpu_custom_call.1} parent=5 // pred_check
        _
      $region38: #{tpu_custom_call.1} parent=5 // pred_check_branch
        %194 = sbr.rel (%p191) target = $region40
      $region39: #{tpu_custom_call.1} parent=5 // pred_region
        %s195 = ssub.s32 %s14, 1
        %p196 = scmp.lt.s32.totalorder %s19, 1
        %s197 = scalar_select %p196, %s19, 1
        %s198 = smul.addr %s197, 2
        %s199 = smul.addr %s198, 4
        %s200 = scalar_lea.vmem %s0, %s199
        %p201 = pneg %p40
        %p202 = pneg %p37
        %p203 = pneg %p61
        %p204 = pneg %p58
        %p205 = pneg %p82
        %p206 = pneg %p79
        %p207 = pneg %p103
        %p208 = pneg %p100
        %p209 = pneg %p124
        %p210 = pneg %p121
        %p211 = pneg %p150
        %p212 = pneg %p147
        %s213 = sand.u32 %s137, 1
        %s214 = scalar_lea.sflag [#allocation4], %s213
        %s215 = sand.u32 %s137, 1
        %s216 = smul.addr %s215, 16
        %s217 = scalar_lea.vmem [#allocation3], %s216
        %p218 = scmp.lt.s32.totalorder %s19, 1
        %s219 = scalar_select %p218, %s19, 1
        %s220 = smul.addr %s219, 2
        %s221 = smul.addr %s220, 4
        %s222 = scalar_lea.vmem %s0, %s221
        %vm223 = vcmask 134144
        %224 = vst.msk [vmem:[#allocation2] sm:$0xf] %vm223, 0.0
        %vm225 = vcmask 273544
        %226 = vst.msk [vmem:[#allocation2 + $0x8] sm:$0xf] %vm225, 0.0
        %v227 = vld [vmem:[%s222] sm:$0xff]
        %229 = vrot.lane.b32.xlu0 %v227, 17
        %v230 = vpop.permute.xlu0 %229
        %v231 = vrot.slane %v230, 4
        %vm232 = vcmask 138240
        %v233 = vsel %vm232, %v231, %v230
        %vm236 = vcmask 1043592
        %vm237 = vcmask 1047556
        %vm238 = vmor %vm237, %vm236
        %239 = vst.msk [vmem:[#allocation2] sm:$0xff] %vm238, %v233
        %240 = vst.msk [vmem:[#allocation2 + $0x8] sm:$0xf] %vm223, %v231
        %v241 = vlaneseq
        %v242 = vand.u32 %v241, 127
        %v243 = vadd.s32 %v242, 128
        %vm244 = vcmp.lt.s32.totalorder %v242, 0
        %v245 = vsub.s32 0, %v242
        %v246 = vsel %vm244, %v245, %v242
        %v247 = vshrl.u32 %v246, 4
        %v248 = vand.u32 %v246, 15
        %v249 = vsub.s32 0, %v248
        %v250 = vsel %vm244, %v249, %v248
        %vm251 = vcmp.lt.s32.totalorder %v243, 0
        %v252 = vsub.s32 0, %v243
        %v253 = vsel %vm251, %v252, %v243
        %v254 = vshrl.u32 %v253, 4
        %v255 = vand.u32 %v253, 15
        %v256 = vsub.s32 0, %v255
        %v257 = vsel %vm251, %v256, %v255
        %vm258 = vcmp.ne.s32.totalorder %v250, 0
        %vm259 = vcmp.ne.s32.totalorder %v257, 0
        %vm260 = vcmp.lt.s32.totalorder %v250, 0
        %vm261 = vcmp.lt.s32.totalorder %v257, 0
        %vm262 = vmand %vm260, %vm258
        %vm263 = vmand %vm261, %vm259
        %v264 = vadd.s32 %v250, 16
        %v265 = vadd.s32 %v257, 16
        %v266 = vsel %vm262, %v264, %v250
        %v267 = vsel %vm263, %v265, %v257
        %vm268 = vcmp.gt.s32.totalorder %v266, 0
        %vm269 = vcmp.gt.s32.totalorder %v267, 0
        %vm270 = vcmp.lt.s32.totalorder %v266, 15
        %vm271 = vcmp.lt.s32.totalorder %v267, 15
        %v272 = vld [vmem:[%s2] sm:$0xf]
        %274 = vset.pattern.permute.xlu0 0
        %275 = vperm.xlu0 %274, %v272
        %v276 = vpop.permute.xlu0 %275
        %v278 = vld [vmem:[%s1] sm:$0xf]
        %v279 = vld [vmem:[#allocation2] sm:$0xff]
        %281 = vset.pattern.permute.xlu0 0
        %282 = vperm.xlu0 %281, %v278
        %v283 = vpop.permute.xlu0 %282
        %v285 = vunpack.c.l.s4 839922192
        %v286 = vunpack.c.0.s8 %v285
        %v287 = vperm.slane %v283, %v286
        %v289 = vmul.f32 %v279, %v287
        %v290 = vadd.f32 %v289, 0.0
        %s291 = scalar_lea.vmem %s1, 12
        %v292 = vld [vmem:[%s291] sm:$0xf]
        %v293 = vld [vmem:[#allocation2] sm:$0xff]
        %v294 = vld [vmem:[#allocation2 + $0x8] sm:$0xf]
        %296 = vset.pattern.permute.xlu0 0
        %297 = vperm.xlu0 %296, %v292
        %v298 = vpop.permute.xlu0 %297
        %v300 = vunpack.c.l.s4 839922192
        %v301 = vunpack.c.0.s8 %v300
        %v302 = vperm.slane %v298, %v301
        %v304 = vmul.f32 %v293, %v302
        %v305 = vmul.f32 %v294, %v302
        %308 = vrot.lane.b32.xlu0 %v304, 112
        %v309 = vpop.permute.xlu0 %308
        %310 = vrot.lane.b32.xlu0 %v305, 112
        %v311 = vpop.permute.xlu0 %310
        %v312 = vrot.slane %v309, 4
        %v313 = vrot.slane %v311, 4
        %vm314 = vcmask 1043456
        %v315 = vsel %vm314, %v312, %v313
        %vm316 = vcmask 916480
        %v317 = vsel %vm316, %v309, %v315
        %v319 = vadd.f32 %v290, %v317
        %s320 = scalar_lea.vmem %s1, 24
        %v321 = vld [vmem:[%s320] sm:$0xf]
        %323 = vset.pattern.permute.xlu0 0
        %324 = vperm.xlu0 %323, %v321
        %v325 = vpop.permute.xlu0 %324
        %v327 = vunpack.c.l.s4 839922192
        %v328 = vunpack.c.0.s8 %v327
        %v329 = vperm.slane %v325, %v328
        %v331 = vmul.f32 %v293, %v329
        %v332 = vmul.f32 %v294, %v329
        %335 = vrot.lane.b32.xlu0 %v331, 96
        %v336 = vpop.permute.xlu0 %335
        %337 = vrot.lane.b32.xlu0 %v332, 96
        %v338 = vpop.permute.xlu0 %337
        %v339 = vrot.slane %v336, 4
        %v340 = vrot.slane %v338, 4
        %v341 = vsel %vm314, %v339, %v340
        %vm342 = vcmask 785408
        %v343 = vsel %vm342, %v336, %v341
        %v345 = vadd.f32 %v319, %v343
        %v346 = vsel %vm268, 1, 0
        %v347 = vsel %vm269, 1, 0
        %vm348 = vcmp.eq.s32.totalorder %v346, 1
        %vm349 = vcmp.eq.s32.totalorder %v347, 1
        %351 = vst [vmem:[#allocation1] ss:$2 sm:$0xff] %v345
        %v352 = vld.sshfl [vmem:[#allocation1] sm:$0xff pattern:$0x75316420]
        %v353 = vld.sshfl [vmem:[#allocation1 + $0x8] sm:$0xff pattern:$0x75316420]
        %v356 = vsel %vm348, %v352, 0.0
        %v357 = vsel %vm349, %v353, 0.0
        %v358 = vadd.f32 %v276, %v356
        %v359 = vadd.f32 %v276, %v357
        %s360 = scalar_lea.vmem %s1, 4
        %v361 = vld [vmem:[%s360] sm:$0xf]
        %v362 = vld [vmem:[#allocation2] sm:$0xff]
        %v363 = vld [vmem:[#allocation2 + $0x8] sm:$0xf]
        %365 = vset.pattern.permute.xlu0 0
        %366 = vperm.xlu0 %365, %v361
        %v367 = vpop.permute.xlu0 %366
        %v369 = vunpack.c.l.s4 839922192
        %v370 = vunpack.c.0.s8 %v369
        %v371 = vperm.slane %v367, %v370
        %v373 = vmul.f32 %v362, %v371
        %v374 = vmul.f32 %v363, %v371
        %v375 = vadd.f32 %v373, 0.0
        %v376 = vadd.f32 %v374, 0.0
        %s377 = scalar_lea.vmem %s1, 16
        %v378 = vld [vmem:[%s377] sm:$0xf]
        %380 = vset.pattern.permute.xlu0 0
        %381 = vperm.xlu0 %380, %v378
        %v382 = vpop.permute.xlu0 %381
        %v384 = vunpack.c.l.s4 839922192
        %v385 = vunpack.c.0.s8 %v384
        %v386 = vperm.slane %v382, %v385
        %v388 = vmul.f32 %v362, %v386
        %v389 = vmul.f32 %v363, %v386
        %392 = vrot.lane.b32.xlu0 %v388, 112
        %v393 = vpop.permute.xlu0 %392
        %394 = vrot.lane.b32.xlu0 %v389, 112
        %v395 = vpop.permute.xlu0 %394
        %v396 = vrot.slane %v393, 4
        %v397 = vrot.slane %v395, 4
        %v398 = vsel %vm314, %v396, %v397
        %v399 = vsel %vm316, %v393, %v398
        %v402 = vadd.f32 %v375, %v399
        %v403 = vadd.f32 %v376, %v395
        %s404 = scalar_lea.vmem %s1, 28
        %v405 = vld [vmem:[%s404] sm:$0xf]
        %407 = vset.pattern.permute.xlu0 0
        %408 = vperm.xlu0 %407, %v405
        %v409 = vpop.permute.xlu0 %408
        %v411 = vunpack.c.l.s4 839922192
        %v412 = vunpack.c.0.s8 %v411
        %v413 = vperm.slane %v409, %v412
        %v415 = vmul.f32 %v362, %v413
        %v416 = vmul.f32 %v363, %v413
        %419 = vrot.lane.b32.xlu0 %v415, 96
        %v420 = vpop.permute.xlu0 %419
        %421 = vrot.lane.b32.xlu0 %v416, 96
        %v422 = vpop.permute.xlu0 %421
        %v423 = vrot.slane %v420, 4
        %v424 = vrot.slane %v422, 4
        %v425 = vsel %vm314, %v423, %v424
        %v426 = vsel %vm342, %v420, %v425
        %v429 = vadd.f32 %v402, %v426
        %v430 = vadd.f32 %v403, %v422
        %433 = vst [vmem:[#allocation1] ss:$2 sm:$0xff] %v429
        %s434 = scalar_lea.vmem [#allocation1], 16
        %435 = vst [vmem:[%s434] ss:$2 sm:$0xff] %v430
        %v436 = vld.sshfl [vmem:[#allocation1] sm:$0xff pattern:$0x75316420]
        %v437 = vld.sshfl [vmem:[#allocation1 + $0x8] sm:$0xff pattern:$0x75316420]
        %v438 = vld.sshfl [vmem:[#allocation1 + $0x10] sm:$0xff pattern:$0x75316420]
        %439 = vrot.lane.b32.xlu0 %v436, 127
        %v440 = vpop.permute.xlu0 %439
        %441 = vrot.lane.b32.xlu0 %v437, 127
        %v442 = vpop.permute.xlu0 %441
        %443 = vrot.lane.b32.xlu0 %v438, 127
        %v444 = vpop.permute.xlu0 %443
        %vm445 = vcmask 1039360
        %v446 = vsel %vm445, %v440, %v442
        %v447 = vsel %vm445, %v442, %v444
        %v450 = vadd.f32 %v358, %v446
        %v451 = vadd.f32 %v359, %v447
        %s452 = scalar_lea.vmem %s1, 8
        %v453 = vld [vmem:[%s452] sm:$0xf]
        %v454 = vld [vmem:[#allocation2] sm:$0xff]
        %v455 = vld [vmem:[#allocation2 + $0x8] sm:$0xf]
        %457 = vset.pattern.permute.xlu0 0
        %458 = vperm.xlu0 %457, %v453
        %v459 = vpop.permute.xlu0 %458
        %v461 = vunpack.c.l.s4 839922192
        %v462 = vunpack.c.0.s8 %v461
        %v463 = vperm.slane %v459, %v462
        %v465 = vmul.f32 %v454, %v463
        %v466 = vmul.f32 %v455, %v463
        %v467 = vadd.f32 %v465, 0.0
        %v468 = vadd.f32 %v466, 0.0
        %s469 = scalar_lea.vmem %s1, 20
        %v470 = vld [vmem:[%s469] sm:$0xf]
        %472 = vset.pattern.permute.xlu0 0
        %473 = vperm.xlu0 %472, %v470
        %v474 = vpop.permute.xlu0 %473
        %v476 = vunpack.c.l.s4 839922192
        %v477 = vunpack.c.0.s8 %v476
        %v478 = vperm.slane %v474, %v477
        %v480 = vmul.f32 %v454, %v478
        %v481 = vmul.f32 %v455, %v478
        %484 = vrot.lane.b32.xlu0 %v480, 112
        %v485 = vpop.permute.xlu0 %484
        %486 = vrot.lane.b32.xlu0 %v481, 112
        %v487 = vpop.permute.xlu0 %486
        %v488 = vrot.slane %v485, 4
        %v489 = vrot.slane %v487, 4
        %v490 = vsel %vm314, %v488, %v489
        %v491 = vsel %vm316, %v485, %v490
        %v494 = vadd.f32 %v467, %v491
        %v495 = vadd.f32 %v468, %v487
        %s496 = scalar_lea.vmem %s1, 32
        %v497 = vld [vmem:[%s496] sm:$0xf]
        %499 = vset.pattern.permute.xlu0 0
        %500 = vperm.xlu0 %499, %v497
        %v501 = vpop.permute.xlu0 %500
        %v503 = vunpack.c.l.s4 839922192
        %v504 = vunpack.c.0.s8 %v503
        %v505 = vperm.slane %v501, %v504
        %v507 = vmul.f32 %v454, %v505
        %v508 = vmul.f32 %v455, %v505
        %511 = vrot.lane.b32.xlu0 %v507, 96
        %v512 = vpop.permute.xlu0 %511
        %513 = vrot.lane.b32.xlu0 %v508, 96
        %v514 = vpop.permute.xlu0 %513
        %v515 = vrot.slane %v512, 4
        %v516 = vrot.slane %v514, 4
        %v517 = vsel %vm314, %v515, %v516
        %v518 = vsel %vm342, %v512, %v517
        %v521 = vadd.f32 %v494, %v518
        %v522 = vadd.f32 %v495, %v514
        %v523 = vsel %vm270, 1, 0
        %v524 = vsel %vm271, 1, 0
        %vm525 = vcmp.eq.s32.totalorder %v523, 1
        %vm526 = vcmp.eq.s32.totalorder %v524, 1
        %529 = vst [vmem:[#allocation1] ss:$2 sm:$0xff] %v521
        %s530 = scalar_lea.vmem [#allocation1], 16
        %531 = vst [vmem:[%s530] ss:$2 sm:$0xff] %v522
        %v532 = vld.sshfl [vmem:[#allocation1] sm:$0xff pattern:$0x75316420]
        %v533 = vld.sshfl [vmem:[#allocation1 + $0x8] sm:$0xff pattern:$0x75316420]
        %v534 = vld.sshfl [vmem:[#allocation1 + $0x10] sm:$0xff pattern:$0x75316420]
        %535 = vrot.lane.b32.xlu0 %v532, 126
        %v536 = vpop.permute.xlu0 %535
        %537 = vrot.lane.b32.xlu0 %v533, 126
        %v538 = vpop.permute.xlu0 %537
        %539 = vrot.lane.b32.xlu0 %v534, 126
        %v540 = vpop.permute.xlu0 %539
        %vm541 = vcmask 1031168
        %v542 = vsel %vm541, %v536, %v538
        %v543 = vsel %vm541, %v538, %v540
        %v546 = vsel %vm525, %v542, 0.0
        %v547 = vsel %vm526, %v543, 0.0
        %v548 = vadd.f32 %v450, %v546
        %v549 = vadd.f32 %v451, %v547
        %v550 = vxor.u32 %v548, 2147483648
        %v551 = vxor.u32 %v549, 2147483648
        %v552 = vmul.f32 %v550, 1.442695
        %v553 = vpow.pop %v552
        %v554 = vmul.f32 %v551, 1.442695
        %v555 = vpow.pop %v554
        %v556 = vadd.f32 %v553, 1.0
        %v557 = vadd.f32 %v555, 1.0
        %v558 = vrcp.pop %v556
        %v559 = vmul.f32 %v556, %v558
        %v560 = vsub.f32 1.0, %v559
        %v561 = vmul.f32 %v558, %v560
        %v562 = vadd.f32 %v558, %v561
        %vm563 = vweird.f32 %v556
        %vm564 = vweird.f32 %v558
        %vm565 = vmor %vm563, %vm564
        %v566 = vsel %vm565, %v558, %v562
        %v567 = vand.u32 2147483647, %v556
        %vm568 = vcmp.eq.f32.partialorder %v567, 8.507059e+37
        %v569 = vand.u32 %v556, 2147483648
        %v570 = vor.u32 1.1754944e-38, %v569
        %v571 = vsel %vm568, %v570, %v566
        %v572 = vmul.f32 1.0, %v571
        %v573 = vrcp.pop %v557
        %v574 = vmul.f32 %v557, %v573
        %v575 = vsub.f32 1.0, %v574
        %v576 = vmul.f32 %v573, %v575
        %v577 = vadd.f32 %v573, %v576
        %vm578 = vweird.f32 %v557
        %vm579 = vweird.f32 %v573
        %vm580 = vmor %vm578, %vm579
        %v581 = vsel %vm580, %v573, %v577
        %v582 = vand.u32 2147483647, %v557
        %vm583 = vcmp.eq.f32.partialorder %v582, 8.507059e+37
        %v584 = vand.u32 %v557, 2147483648
        %v585 = vor.u32 1.1754944e-38, %v584
        %v586 = vsel %vm583, %v585, %v581
        %v587 = vmul.f32 1.0, %v586
        %v588 = vmul.f32 %v548, %v572
        %v589 = vmul.f32 %v549, %v587
        %v590 = vld [vmem:[%s3] sm:$0xff]
        %v591 = vld [vmem:[%s4] sm:$0xff]
        %593 = vset.pattern.permute.xlu0 0
        %594 = vperm.xlu0 %593, %v591
        %v595 = vpop.permute.xlu0 %594
        %vm597 = vcmask 31744
        %v599 = vsel %vm597, %v590, 0
        %v602 = vsel %vm314, %v588, 0
        %v605 = vsel %vm314, %v589, 0
        %607 = vmatpush.msra.mxu0 0.0
        %608 = vmatpush.msra.mxu0 0.0
        %609 = vmatpush.msra.mxu0 0.0
        %610 = vmatpush.msra.mxu0 0.0
        %611 = vmatpush.msra.mxu0 0.0
        %612 = vmatpush.msra.mxu0 0.0
        %613 = vmatpush.msra.mxu0 0.0
        %614 = vmatpush.msra.mxu0 0.0
        %615 = vmatpush.msra.mxu0 0.0
        %616 = vmatpush.msra.mxu0 0.0
        %617 = vmatpush.msra.mxu0 0.0
        %618 = vmatpush.msra.mxu0 0.0
        %619 = vmatpush.msra.mxu0 0.0
        %620 = vmatpush.msra.mxu0 0.0
        %621 = vmatpush.msra.mxu0 0.0
        %622 = vmatpush.msra.mxu0 %v602
        %623 = vmatmul.f32.gmra.mxu0 %v599
        %v624 = vpop.f32.mrf.mxu0
        %v625 = vadd.f32 %v595, %v624
        %626 = vdwg.mxu0
        %627 = vmatpush.msra.mxu0 0.0
        %628 = vmatpush.msra.mxu0 0.0
        %629 = vmatpush.msra.mxu0 0.0
        %630 = vmatpush.msra.mxu0 0.0
        %631 = vmatpush.msra.mxu0 0.0
        %632 = vmatpush.msra.mxu0 0.0
        %633 = vmatpush.msra.mxu0 0.0
        %634 = vmatpush.msra.mxu0 0.0
        %635 = vmatpush.msra.mxu0 0.0
        %636 = vmatpush.msra.mxu0 0.0
        %637 = vmatpush.msra.mxu0 0.0
        %638 = vmatpush.msra.mxu0 0.0
        %639 = vmatpush.msra.mxu0 0.0
        %640 = vmatpush.msra.mxu0 0.0
        %641 = vmatpush.msra.mxu0 0.0
        %642 = vmatpush.msra.mxu0 %v605
        %643 = vmatmul.f32.gmra.mxu0 %v599
        %v644 = vpop.f32.mrf.mxu0
        %v645 = vadd.f32 %v595, %v644
        %646 = vdwg.mxu0
        %v647 = vxor.u32 %v625, 2147483648
        %v648 = vxor.u32 %v645, 2147483648
        %v649 = vmul.f32 %v647, 1.442695
        %v650 = vpow.pop %v649
        %v651 = vmul.f32 %v648, 1.442695
        %v652 = vpow.pop %v651
        %v653 = vadd.f32 %v650, 1.0
        %v654 = vadd.f32 %v652, 1.0
        %v655 = vrcp.pop %v653
        %v656 = vmul.f32 %v653, %v655
        %v657 = vsub.f32 1.0, %v656
        %v658 = vmul.f32 %v655, %v657
        %v659 = vadd.f32 %v655, %v658
        %vm660 = vweird.f32 %v653
        %vm661 = vweird.f32 %v655
        %vm662 = vmor %vm660, %vm661
        %v663 = vsel %vm662, %v655, %v659
        %v664 = vand.u32 2147483647, %v653
        %vm665 = vcmp.eq.f32.partialorder %v664, 8.507059e+37
        %v666 = vand.u32 %v653, 2147483648
        %v667 = vor.u32 1.1754944e-38, %v666
        %v668 = vsel %vm665, %v667, %v663
        %v669 = vmul.f32 1.0, %v668
        %v670 = vrcp.pop %v654
        %v671 = vmul.f32 %v654, %v670
        %v672 = vsub.f32 1.0, %v671
        %v673 = vmul.f32 %v670, %v672
        %v674 = vadd.f32 %v670, %v673
        %vm675 = vweird.f32 %v654
        %vm676 = vweird.f32 %v670
        %vm677 = vmor %vm675, %vm676
        %v678 = vsel %vm677, %v670, %v674
        %v679 = vand.u32 2147483647, %v654
        %vm680 = vcmp.eq.f32.partialorder %v679, 8.507059e+37
        %v681 = vand.u32 %v654, 2147483648
        %v682 = vor.u32 1.1754944e-38, %v681
        %v683 = vsel %vm680, %v682, %v678
        %v684 = vmul.f32 1.0, %v683
        %v685 = vmul.f32 %v625, %v669
        %v686 = vmul.f32 %v645, %v684
        %687 = vst [vmem:[%s217] sm:$0xff] %v685
        %688 = vst [vmem:[%s217 + $0x8] sm:$0xff] %v686
        %s689 = sand.u32 %s137, 1
        %s690 = scalar_lea.sflag [#allocation4], %s689
        %s691 = sand.u32 %s137, 1
        %s692 = smul.addr %s691, 16
        %s693 = scalar_lea.vmem [#allocation3], %s692
        // Predicated region
        $region41: #{tpu_custom_call.1} parent=39 // pred_check
          %p694 = pneg %p147
        $region42: #{tpu_custom_call.1} parent=39 // pred_check_branch
          %696 = sbr.rel (%p694) target = $region44
        $region43: #{tpu_custom_call.1} parent=39 // pred_region
          %698 = vsyncadd %s690, 0
          %s699 = smul.addr %s19, 2
          %s700 = smul.addr %s699, 8
          %s701 = scalar_lea.hbm %s5, %s700
          %s703 = sshll.u32 %s693, 4
          %s704 = int_to_ptr.vmem [resolvable:$true] %s703
          %s705 = sshll.u32 %s701, 4
          %s706 = int_to_ptr.hbm [resolvable:$true] %s705
          %708 = dma.vmem_to_hbm [thread:$0]  %s704, 256, %s706, %s690
        $region44: #{tpu_custom_call.1} parent=39 // pred_fallthru
          _
      $region40: #{tpu_custom_call.1} parent=5 // pred_fallthru
        _
      %p709 = scmp.le.s32.totalorder 2, %s14
      // Predicated region
      $region45: #{tpu_custom_call.1} parent=5 // pred_check
        %p710 = pneg %p709
      $region46: #{tpu_custom_call.1} parent=5 // pred_check_branch
        %712 = sbr.rel (%p710) target = $region48
      $region47: #{tpu_custom_call.1} parent=5 // pred_region
        %s713 = ssub.s32 %s14, 2
        // Predicated region
        $region49: #{tpu_custom_call.1} parent=47 // pred_check
          %p714 = pneg %p153
        $region50: #{tpu_custom_call.1} parent=47 // pred_check_branch
          %716 = sbr.rel (%p714) target = $region52
        $region51: #{tpu_custom_call.1} parent=47 // pred_region
          %s717 = sand.u32 %s138, 1
          %s718 = scalar_lea.sflag [#allocation4], %s717
          %s719 = sand.u32 %s138, 1
          %s720 = smul.addr %s719, 16
          %s721 = scalar_lea.vmem [#allocation3], %s720
          %723 = dma.done %s718, 256
        $region52: #{tpu_custom_call.1} parent=47 // pred_fallthru
          _
      $region48: #{tpu_custom_call.1} parent=5 // pred_fallthru
        _
    $region6: #{tpu_custom_call.1} parent=1 // loop_footer
      %s18 = sadd.s32 1, %s14
    $region7: #{tpu_custom_call.1} parent=1 // loop_footer_branch
      %13 = sbr.rel target = $region3
    $region8: #{tpu_custom_call.1} parent=1 // loop_exit
      _
    %724 = vsyncpa [#allocation4], 1
    %s725 = scalar_lea.sflag [#allocation4], 1
    %726 = vsyncpa %s725, 1

</llo_original>
